<compile_context>
chip_gen: v7x
topology: tpu7x:2x2x1
jax: 0.10.0
libtpu: 0.0.40
codegen_flags: <defaults>
</compile_context>

<pallas_src>
import math

import jax
import jax.numpy as jnp
from jax.experimental import pallas as pl
from jax.experimental.pallas import tpu as pltpu

_LANE = 128
_MiB = 1024 * 1024
_TARGET_CHUNK_BYTES = 4 * _MiB   # per-DMA chunk size for the HBM->HBM path
_MAX_CHUNKS = 16                 # cap on statically-unrolled DMA issues
_DMA_SLOTS = 4                   # max outstanding DMAs (per-slot semaphores)


def _sublane(itemsize):
    """Native packed sublane count for the dtype (8 f32, 16 bf16, 32 int8)."""
    return max(8, 32 // int(itemsize))


def _vmem_capacity_bytes():
    """Per-core VMEM bytes, with a conservative (v7x) fallback."""
    try:
        cap = int(getattr(pltpu.get_tpu_info(), "vmem_capacity_bytes"))
        if cap > 0:
            return cap
    except Exception:
        pass
    return 64 * _MiB  # v7x per-TC VMEM — safe lower bound


# ---------------------------------------------------------------------------
# Primary path: chunked HBM -> HBM DMA (no VMEM bounce at all).
# ---------------------------------------------------------------------------
def _make_hbm_copy_kernel(chunks, n_slots):
    """chunks: static (start, size) slices along the leading axis."""
    def kernel(x_hbm, o_hbm, sems):
        descs = []
        for i, (start, size) in enumerate(chunks):
            if i >= n_slots:
                # Keep at most n_slots DMAs in flight.
                descs[i - n_slots].wait()
            cp = pltpu.make_async_copy(
                x_hbm.at[pl.ds(start, size)],
                o_hbm.at[pl.ds(start, size)],
                sems.at[i % n_slots],
            )
            cp.start()
            descs.append(cp)
        for cp in descs[-n_slots:]:
            cp.wait()
    return kernel


def _dma_copy(batch):
    shape = batch.shape
    dtype = batch.dtype
    itemsize = jnp.dtype(dtype).itemsize
    total = int(math.prod(shape))
    total_bytes = total * itemsize

    # DMA engines don't care about lane density; a (rows, 128) view just keeps
    # the descriptors nicely shaped.  The reshape is a free bitcast for the
    # contiguous row-major batch.
    if total % _LANE == 0 and total > _LANE:
        view = (total // _LANE, _LANE)
    else:
        view = (total,)
    lead = view[0]

    # ~4 MiB chunks, capped at 16; small arrays still get a few chunks so the
    # outstanding-DMA rotation is exercised (overhead is negligible).
    n_chunks = -(-total_bytes // _TARGET_CHUNK_BYTES)
    n_chunks = int(max(1, min(_MAX_CHUNKS, n_chunks)))
    n_chunks = int(min(lead, max(n_chunks, min(2 * _DMA_SLOTS, lead))))
    chunk_rows = -(-lead // n_chunks)
    chunks, start = [], 0
    while start < lead:
        size = min(chunk_rows, lead - start)
        chunks.append((start, size))
        start += size
    n_slots = min(_DMA_SLOTS, len(chunks))

    x = batch.reshape(view)
    out = pl.pallas_call(
        _make_hbm_copy_kernel(tuple(chunks), n_slots),
        out_shape=jax.ShapeDtypeStruct(view, dtype),
        in_specs=[pl.BlockSpec(memory_space=pl.ANY)],
        out_specs=pl.BlockSpec(memory_space=pl.ANY),
        scratch_shapes=[pltpu.SemaphoreType.DMA((n_slots,))],
        cost_estimate=pl.CostEstimate(flops=0, transcendentals=0,
                                      bytes_accessed=2 * total_bytes),
    )(x)
    return out.reshape(shape)


# ---------------------------------------------------------------------------
# Fallback path: BlockSpec-pipelined VMEM copy (retuned per perf review).
# ---------------------------------------------------------------------------
def _identity_kernel(x_ref, o_ref):
    # Abstract base class defines no transformation: pass the tile through.
    o_ref[...] = x_ref[...]


def _pipelined_copy(batch):
    shape = batch.shape
    dtype = batch.dtype
    itemsize = jnp.dtype(dtype).itemsize
    total = int(math.prod(shape))
    sublane = _sublane(itemsize)

    # Lane-dense view; if no 128-multiple divides the element count, pad the
    # flattened array up to a (sublane*128) multiple so every store stays a
    # full-width vst (the wrapper pad/slice only triggers for rare odd totals).
    lane = next((c for c in (1024, 512, 256, 128) if total % c == 0), None)
    padded_total = total
    if lane is None:
        lane = _LANE
        granule = sublane * _LANE
        padded_total = -(-total // granule) * granule
    rows = padded_total // lane

    x1d = batch.reshape(total)
    if padded_total != total:
        x1d = jnp.pad(x1d, (0, padded_total - total))
    x2d = x1d.reshape(rows, lane)

    vmem_cap = min(_vmem_capacity_bytes(), 64 * _MiB)  # clamp: v7x per-TC
    # 2-4 MiB tiles: copy roofline already saturates there and the smaller
    # tiles keep >= 8 grid steps (pipelining + both v7x TensorCores busy).
    tile_budget = min(4 * _MiB, max(512 * 1024, vmem_cap // 16))
    max_rows = max(sublane, tile_budget // (lane * itemsize))

    if rows <= sublane:
        block_rows = rows                                   # tiny: full extent
    else:
        block_rows = min(rows, max_rows)
        block_rows = max(sublane, (block_rows // sublane) * sublane)
        min_steps = 8                                       # >= 4 per TC on v7x
        if pl.cdiv(rows, block_rows) < min_steps:
            # Near-equal, sublane-aligned split instead of one fat block.
            target = -(-rows // min_steps)
            target = -(-target // sublane) * sublane
            block_rows = int(max(sublane, min(block_rows, target)))

    grid = (int(pl.cdiv(rows, block_rows)),)                # masked last block
    tile_bytes = block_rows * lane * itemsize
    # 4 live double-buffered tiles + 4 MiB headroom for Mosaic scratch.
    vmem_limit = int(min(48 * _MiB, max(16 * _MiB, 4 * tile_bytes + 4 * _MiB)))

    out2d = pl.pallas_call(
        _identity_kernel,
        out_shape=jax.ShapeDtypeStruct((rows, lane), dtype),
        grid_spec=pltpu.PrefetchScalarGridSpec(
            num_scalar_prefetch=0,
            grid=grid,
            in_specs=[pl.BlockSpec((block_rows, lane), lambda i: (i, 0))],
            out_specs=pl.BlockSpec((block_rows, lane), lambda i: (i, 0)),
        ),
        compiler_params=pltpu.CompilerParams(
            dimension_semantics=("parallel",),
            vmem_limit_bytes=vmem_limit,
        ),
        cost_estimate=pl.CostEstimate(flops=0, transcendentals=0,
                                      bytes_accessed=2 * padded_total * itemsize),
    )(x2d)

    out1d = out2d.reshape(padded_total)
    if padded_total != total:
        out1d = out1d[:total]
    return out1d.reshape(shape)


# ---------------------------------------------------------------------------
# Public forward.
# ---------------------------------------------------------------------------
def base_decoder_forward(batch, *, copy=True, method="dma"):
    """Pallas realization of BaseDecoder's (trivial) forward contract.

    copy=False returns `batch` untouched (zero HBM traffic — the optimal
    implementation of the identity contract, equivalent to donating the
    buffer); copy=True materializes a fresh buffer via the HBM->HBM DMA path
    (method="dma", default) or the BlockSpec-pipelined VMEM copy
    (method="pipelined").
    """
    if not copy:
        return batch
    if method == "dma":
        try:
            return _dma_copy(batch)
        except Exception:
            # Safety net: if the raw HBM->HBM DMA path fails to lower on this
            # backend, fall back to the proven BlockSpec-pipelined copy.
            return _pipelined_copy(batch)
    return _pipelined_copy(batch)


class BaseDecoderPallas:
    """Mirror of the PyTorch BaseDecoder: holds config, no parameters."""

    def __init__(self, config):
        self.config = config

    def __call__(self, batch, *, copy=True, method="dma"):
        return base_decoder_forward(batch, copy=copy, method=method)


if __name__ == "__main__":
    key = jax.random.PRNGKey(0)
    # Small NCHW input consistent with a decoder-style batch.
    x = jax.random.normal(key, (2, 4, 16, 16), dtype=jnp.float32)

    decoder = BaseDecoderPallas(config={"note": "abstract base decoder"})

    y_dma = jax.block_until_ready(decoder(x))                       # HBM->HBM DMA
    y_pipe = jax.block_until_ready(decoder(x, method="pipelined"))  # VMEM pipeline
    y_noop = decoder(x, copy=False)                                 # zero traffic

    for y in (y_dma, y_pipe, y_noop):
        assert y.shape == x.shape and y.dtype == x.dtype
        assert bool(jnp.array_equal(y, x)), "identity pass-through mismatch"
    print("KERNEL_OK")
</pallas_src>

<mosaic_0001>
module attributes {stable_mosaic.version = 11 : i64} {
  func.func @kernel(%arg0: memref<16x128xf32, #tpu.memory_space<any>>, %arg1: memref<16x128xf32, #tpu.memory_space<any>>, %arg2: memref<4x!tpu.dma_semaphore, #tpu.memory_space<semaphore_mem>>) attributes {dimension_semantics = [], scalar_prefetch = 0 : i64, scratch_operands = 1 : i64, tpu.core_type = #tpu.core_type<tc>} {
    %c0_i32 = arith.constant 0 : i32
    %c0_i32_0 = arith.constant 0 : i32
    %c0_i32_1 = arith.constant 0 : i32
    %0 = tpu.memref_slice %arg0[%c0_i32_0, %c0_i32_1] : memref<16x128xf32, #tpu.memory_space<any>> -> memref<2x128xf32, #tpu.memory_space<any>>
    %c0_i32_2 = arith.constant 0 : i32
    %c0_i32_3 = arith.constant 0 : i32
    %1 = tpu.memref_slice %arg1[%c0_i32_2, %c0_i32_3] : memref<16x128xf32, #tpu.memory_space<any>> -> memref<2x128xf32, #tpu.memory_space<any>>
    %2 = tpu.memref_slice %arg2[%c0_i32] : memref<4x!tpu.dma_semaphore, #tpu.memory_space<semaphore_mem>> -> memref<1x!tpu.dma_semaphore, #tpu.memory_space<semaphore_mem>>
    %3 = tpu.memref_squeeze %2 : memref<1x!tpu.dma_semaphore, #tpu.memory_space<semaphore_mem>> -> memref<!tpu.dma_semaphore, #tpu.memory_space<semaphore_mem>>
    tpu.enqueue_dma source(%0 : memref<2x128xf32, #tpu.memory_space<any>>) target(%1 : memref<2x128xf32, #tpu.memory_space<any>>) target_semaphore(%3 : memref<!tpu.dma_semaphore, #tpu.memory_space<semaphore_mem>>)
    %c1_i32 = arith.constant 1 : i32
    %c2_i32 = arith.constant 2 : i32
    %c0_i32_4 = arith.constant 0 : i32
    %4 = tpu.memref_slice %arg0[%c2_i32, %c0_i32_4] : memref<16x128xf32, #tpu.memory_space<any>> -> memref<2x128xf32, #tpu.memory_space<any>>
    %c2_i32_5 = arith.constant 2 : i32
    %c0_i32_6 = arith.constant 0 : i32
    %5 = tpu.memref_slice %arg1[%c2_i32_5, %c0_i32_6] : memref<16x128xf32, #tpu.memory_space<any>> -> memref<2x128xf32, #tpu.memory_space<any>>
    %6 = tpu.memref_slice %arg2[%c1_i32] : memref<4x!tpu.dma_semaphore, #tpu.memory_space<semaphore_mem>> -> memref<1x!tpu.dma_semaphore, #tpu.memory_space<semaphore_mem>>
    %7 = tpu.memref_squeeze %6 : memref<1x!tpu.dma_semaphore, #tpu.memory_space<semaphore_mem>> -> memref<!tpu.dma_semaphore, #tpu.memory_space<semaphore_mem>>
    tpu.enqueue_dma source(%4 : memref<2x128xf32, #tpu.memory_space<any>>) target(%5 : memref<2x128xf32, #tpu.memory_space<any>>) target_semaphore(%7 : memref<!tpu.dma_semaphore, #tpu.memory_space<semaphore_mem>>)
    %c2_i32_7 = arith.constant 2 : i32
    %c4_i32 = arith.constant 4 : i32
    %c0_i32_8 = arith.constant 0 : i32
    %8 = tpu.memref_slice %arg0[%c4_i32, %c0_i32_8] : memref<16x128xf32, #tpu.memory_space<any>> -> memref<2x128xf32, #tpu.memory_space<any>>
    %c4_i32_9 = arith.constant 4 : i32
    %c0_i32_10 = arith.constant 0 : i32
    %9 = tpu.memref_slice %arg1[%c4_i32_9, %c0_i32_10] : memref<16x128xf32, #tpu.memory_space<any>> -> memref<2x128xf32, #tpu.memory_space<any>>
    %10 = tpu.memref_slice %arg2[%c2_i32_7] : memref<4x!tpu.dma_semaphore, #tpu.memory_space<semaphore_mem>> -> memref<1x!tpu.dma_semaphore, #tpu.memory_space<semaphore_mem>>
    %11 = tpu.memref_squeeze %10 : memref<1x!tpu.dma_semaphore, #tpu.memory_space<semaphore_mem>> -> memref<!tpu.dma_semaphore, #tpu.memory_space<semaphore_mem>>
    tpu.enqueue_dma source(%8 : memref<2x128xf32, #tpu.memory_space<any>>) target(%9 : memref<2x128xf32, #tpu.memory_space<any>>) target_semaphore(%11 : memref<!tpu.dma_semaphore, #tpu.memory_space<semaphore_mem>>)
    %c3_i32 = arith.constant 3 : i32
    %c6_i32 = arith.constant 6 : i32
    %c0_i32_11 = arith.constant 0 : i32
    %12 = tpu.memref_slice %arg0[%c6_i32, %c0_i32_11] : memref<16x128xf32, #tpu.memory_space<any>> -> memref<2x128xf32, #tpu.memory_space<any>>
    %c6_i32_12 = arith.constant 6 : i32
    %c0_i32_13 = arith.constant 0 : i32
    %13 = tpu.memref_slice %arg1[%c6_i32_12, %c0_i32_13] : memref<16x128xf32, #tpu.memory_space<any>> -> memref<2x128xf32, #tpu.memory_space<any>>
    %14 = tpu.memref_slice %arg2[%c3_i32] : memref<4x!tpu.dma_semaphore, #tpu.memory_space<semaphore_mem>> -> memref<1x!tpu.dma_semaphore, #tpu.memory_space<semaphore_mem>>
    %15 = tpu.memref_squeeze %14 : memref<1x!tpu.dma_semaphore, #tpu.memory_space<semaphore_mem>> -> memref<!tpu.dma_semaphore, #tpu.memory_space<semaphore_mem>>
    tpu.enqueue_dma source(%12 : memref<2x128xf32, #tpu.memory_space<any>>) target(%13 : memref<2x128xf32, #tpu.memory_space<any>>) target_semaphore(%15 : memref<!tpu.dma_semaphore, #tpu.memory_space<semaphore_mem>>)
    %c0_i32_14 = arith.constant 0 : i32
    %c0_i32_15 = arith.constant 0 : i32
    %c0_i32_16 = arith.constant 0 : i32
    %16 = tpu.memref_slice %arg0[%c0_i32_15, %c0_i32_16] : memref<16x128xf32, #tpu.memory_space<any>> -> memref<2x128xf32, #tpu.memory_space<any>>
    %c0_i32_17 = arith.constant 0 : i32
    %c0_i32_18 = arith.constant 0 : i32
    %17 = tpu.memref_slice %arg1[%c0_i32_17, %c0_i32_18] : memref<16x128xf32, #tpu.memory_space<any>> -> memref<2x128xf32, #tpu.memory_space<any>>
    %18 = tpu.memref_slice %arg2[%c0_i32_14] : memref<4x!tpu.dma_semaphore, #tpu.memory_space<semaphore_mem>> -> memref<1x!tpu.dma_semaphore, #tpu.memory_space<semaphore_mem>>
    %19 = tpu.memref_squeeze %18 : memref<1x!tpu.dma_semaphore, #tpu.memory_space<semaphore_mem>> -> memref<!tpu.dma_semaphore, #tpu.memory_space<semaphore_mem>>
    tpu.wait_dma2 semaphore(%19 : memref<!tpu.dma_semaphore, #tpu.memory_space<semaphore_mem>>) src(%16 : memref<2x128xf32, #tpu.memory_space<any>>) dst(%17 : memref<2x128xf32, #tpu.memory_space<any>>)
    %c0_i32_19 = arith.constant 0 : i32
    %c8_i32 = arith.constant 8 : i32
    %c0_i32_20 = arith.constant 0 : i32
    %20 = tpu.memref_slice %arg0[%c8_i32, %c0_i32_20] : memref<16x128xf32, #tpu.memory_space<any>> -> memref<2x128xf32, #tpu.memory_space<any>>
    %c8_i32_21 = arith.constant 8 : i32
    %c0_i32_22 = arith.constant 0 : i32
    %21 = tpu.memref_slice %arg1[%c8_i32_21, %c0_i32_22] : memref<16x128xf32, #tpu.memory_space<any>> -> memref<2x128xf32, #tpu.memory_space<any>>
    %22 = tpu.memref_slice %arg2[%c0_i32_19] : memref<4x!tpu.dma_semaphore, #tpu.memory_space<semaphore_mem>> -> memref<1x!tpu.dma_semaphore, #tpu.memory_space<semaphore_mem>>
    %23 = tpu.memref_squeeze %22 : memref<1x!tpu.dma_semaphore, #tpu.memory_space<semaphore_mem>> -> memref<!tpu.dma_semaphore, #tpu.memory_space<semaphore_mem>>
    tpu.enqueue_dma source(%20 : memref<2x128xf32, #tpu.memory_space<any>>) target(%21 : memref<2x128xf32, #tpu.memory_space<any>>) target_semaphore(%23 : memref<!tpu.dma_semaphore, #tpu.memory_space<semaphore_mem>>)
    %c1_i32_23 = arith.constant 1 : i32
    %c2_i32_24 = arith.constant 2 : i32
    %c0_i32_25 = arith.constant 0 : i32
    %24 = tpu.memref_slice %arg0[%c2_i32_24, %c0_i32_25] : memref<16x128xf32, #tpu.memory_space<any>> -> memref<2x128xf32, #tpu.memory_space<any>>
    %c2_i32_26 = arith.constant 2 : i32
    %c0_i32_27 = arith.constant 0 : i32
    %25 = tpu.memref_slice %arg1[%c2_i32_26, %c0_i32_27] : memref<16x128xf32, #tpu.memory_space<any>> -> memref<2x128xf32, #tpu.memory_space<any>>
    %26 = tpu.memref_slice %arg2[%c1_i32_23] : memref<4x!tpu.dma_semaphore, #tpu.memory_space<semaphore_mem>> -> memref<1x!tpu.dma_semaphore, #tpu.memory_space<semaphore_mem>>
    %27 = tpu.memref_squeeze %26 : memref<1x!tpu.dma_semaphore, #tpu.memory_space<semaphore_mem>> -> memref<!tpu.dma_semaphore, #tpu.memory_space<semaphore_mem>>
    tpu.wait_dma2 semaphore(%27 : memref<!tpu.dma_semaphore, #tpu.memory_space<semaphore_mem>>) src(%24 : memref<2x128xf32, #tpu.memory_space<any>>) dst(%25 : memref<2x128xf32, #tpu.memory_space<any>>)
    %c1_i32_28 = arith.constant 1 : i32
    %c10_i32 = arith.constant 10 : i32
    %c0_i32_29 = arith.constant 0 : i32
    %28 = tpu.memref_slice %arg0[%c10_i32, %c0_i32_29] : memref<16x128xf32, #tpu.memory_space<any>> -> memref<2x128xf32, #tpu.memory_space<any>>
    %c10_i32_30 = arith.constant 10 : i32
    %c0_i32_31 = arith.constant 0 : i32
    %29 = tpu.memref_slice %arg1[%c10_i32_30, %c0_i32_31] : memref<16x128xf32, #tpu.memory_space<any>> -> memref<2x128xf32, #tpu.memory_space<any>>
    %30 = tpu.memref_slice %arg2[%c1_i32_28] : memref<4x!tpu.dma_semaphore, #tpu.memory_space<semaphore_mem>> -> memref<1x!tpu.dma_semaphore, #tpu.memory_space<semaphore_mem>>
    %31 = tpu.memref_squeeze %30 : memref<1x!tpu.dma_semaphore, #tpu.memory_space<semaphore_mem>> -> memref<!tpu.dma_semaphore, #tpu.memory_space<semaphore_mem>>
    tpu.enqueue_dma source(%28 : memref<2x128xf32, #tpu.memory_space<any>>) target(%29 : memref<2x128xf32, #tpu.memory_space<any>>) target_semaphore(%31 : memref<!tpu.dma_semaphore, #tpu.memory_space<semaphore_mem>>)
    %c2_i32_32 = arith.constant 2 : i32
    %c4_i32_33 = arith.constant 4 : i32
    %c0_i32_34 = arith.constant 0 : i32
    %32 = tpu.memref_slice %arg0[%c4_i32_33, %c0_i32_34] : memref<16x128xf32, #tpu.memory_space<any>> -> memref<2x128xf32, #tpu.memory_space<any>>
    %c4_i32_35 = arith.constant 4 : i32
    %c0_i32_36 = arith.constant 0 : i32
    %33 = tpu.memref_slice %arg1[%c4_i32_35, %c0_i32_36] : memref<16x128xf32, #tpu.memory_space<any>> -> memref<2x128xf32, #tpu.memory_space<any>>
    %34 = tpu.memref_slice %arg2[%c2_i32_32] : memref<4x!tpu.dma_semaphore, #tpu.memory_space<semaphore_mem>> -> memref<1x!tpu.dma_semaphore, #tpu.memory_space<semaphore_mem>>
    %35 = tpu.memref_squeeze %34 : memref<1x!tpu.dma_semaphore, #tpu.memory_space<semaphore_mem>> -> memref<!tpu.dma_semaphore, #tpu.memory_space<semaphore_mem>>
    tpu.wait_dma2 semaphore(%35 : memref<!tpu.dma_semaphore, #tpu.memory_space<semaphore_mem>>) src(%32 : memref<2x128xf32, #tpu.memory_space<any>>) dst(%33 : memref<2x128xf32, #tpu.memory_space<any>>)
    %c2_i32_37 = arith.constant 2 : i32
    %c12_i32 = arith.constant 12 : i32
    %c0_i32_38 = arith.constant 0 : i32
    %36 = tpu.memref_slice %arg0[%c12_i32, %c0_i32_38] : memref<16x128xf32, #tpu.memory_space<any>> -> memref<2x128xf32, #tpu.memory_space<any>>
    %c12_i32_39 = arith.constant 12 : i32
    %c0_i32_40 = arith.constant 0 : i32
    %37 = tpu.memref_slice %arg1[%c12_i32_39, %c0_i32_40] : memref<16x128xf32, #tpu.memory_space<any>> -> memref<2x128xf32, #tpu.memory_space<any>>
    %38 = tpu.memref_slice %arg2[%c2_i32_37] : memref<4x!tpu.dma_semaphore, #tpu.memory_space<semaphore_mem>> -> memref<1x!tpu.dma_semaphore, #tpu.memory_space<semaphore_mem>>
    %39 = tpu.memref_squeeze %38 : memref<1x!tpu.dma_semaphore, #tpu.memory_space<semaphore_mem>> -> memref<!tpu.dma_semaphore, #tpu.memory_space<semaphore_mem>>
    tpu.enqueue_dma source(%36 : memref<2x128xf32, #tpu.memory_space<any>>) target(%37 : memref<2x128xf32, #tpu.memory_space<any>>) target_semaphore(%39 : memref<!tpu.dma_semaphore, #tpu.memory_space<semaphore_mem>>)
    %c3_i32_41 = arith.constant 3 : i32
    %c6_i32_42 = arith.constant 6 : i32
    %c0_i32_43 = arith.constant 0 : i32
    %40 = tpu.memref_slice %arg0[%c6_i32_42, %c0_i32_43] : memref<16x128xf32, #tpu.memory_space<any>> -> memref<2x128xf32, #tpu.memory_space<any>>
    %c6_i32_44 = arith.constant 6 : i32
    %c0_i32_45 = arith.constant 0 : i32
    %41 = tpu.memref_slice %arg1[%c6_i32_44, %c0_i32_45] : memref<16x128xf32, #tpu.memory_space<any>> -> memref<2x128xf32, #tpu.memory_space<any>>
    %42 = tpu.memref_slice %arg2[%c3_i32_41] : memref<4x!tpu.dma_semaphore, #tpu.memory_space<semaphore_mem>> -> memref<1x!tpu.dma_semaphore, #tpu.memory_space<semaphore_mem>>
    %43 = tpu.memref_squeeze %42 : memref<1x!tpu.dma_semaphore, #tpu.memory_space<semaphore_mem>> -> memref<!tpu.dma_semaphore, #tpu.memory_space<semaphore_mem>>
    tpu.wait_dma2 semaphore(%43 : memref<!tpu.dma_semaphore, #tpu.memory_space<semaphore_mem>>) src(%40 : memref<2x128xf32, #tpu.memory_space<any>>) dst(%41 : memref<2x128xf32, #tpu.memory_space<any>>)
    %c3_i32_46 = arith.constant 3 : i32
    %c14_i32 = arith.constant 14 : i32
    %c0_i32_47 = arith.constant 0 : i32
    %44 = tpu.memref_slice %arg0[%c14_i32, %c0_i32_47] : memref<16x128xf32, #tpu.memory_space<any>> -> memref<2x128xf32, #tpu.memory_space<any>>
    %c14_i32_48 = arith.constant 14 : i32
    %c0_i32_49 = arith.constant 0 : i32
    %45 = tpu.memref_slice %arg1[%c14_i32_48, %c0_i32_49] : memref<16x128xf32, #tpu.memory_space<any>> -> memref<2x128xf32, #tpu.memory_space<any>>
    %46 = tpu.memref_slice %arg2[%c3_i32_46] : memref<4x!tpu.dma_semaphore, #tpu.memory_space<semaphore_mem>> -> memref<1x!tpu.dma_semaphore, #tpu.memory_space<semaphore_mem>>
    %47 = tpu.memref_squeeze %46 : memref<1x!tpu.dma_semaphore, #tpu.memory_space<semaphore_mem>> -> memref<!tpu.dma_semaphore, #tpu.memory_space<semaphore_mem>>
    tpu.enqueue_dma source(%44 : memref<2x128xf32, #tpu.memory_space<any>>) target(%45 : memref<2x128xf32, #tpu.memory_space<any>>) target_semaphore(%47 : memref<!tpu.dma_semaphore, #tpu.memory_space<semaphore_mem>>)
    %c0_i32_50 = arith.constant 0 : i32
    %c8_i32_51 = arith.constant 8 : i32
    %c0_i32_52 = arith.constant 0 : i32
    %48 = tpu.memref_slice %arg0[%c8_i32_51, %c0_i32_52] : memref<16x128xf32, #tpu.memory_space<any>> -> memref<2x128xf32, #tpu.memory_space<any>>
    %c8_i32_53 = arith.constant 8 : i32
    %c0_i32_54 = arith.constant 0 : i32
    %49 = tpu.memref_slice %arg1[%c8_i32_53, %c0_i32_54] : memref<16x128xf32, #tpu.memory_space<any>> -> memref<2x128xf32, #tpu.memory_space<any>>
    %50 = tpu.memref_slice %arg2[%c0_i32_50] : memref<4x!tpu.dma_semaphore, #tpu.memory_space<semaphore_mem>> -> memref<1x!tpu.dma_semaphore, #tpu.memory_space<semaphore_mem>>
    %51 = tpu.memref_squeeze %50 : memref<1x!tpu.dma_semaphore, #tpu.memory_space<semaphore_mem>> -> memref<!tpu.dma_semaphore, #tpu.memory_space<semaphore_mem>>
    tpu.wait_dma2 semaphore(%51 : memref<!tpu.dma_semaphore, #tpu.memory_space<semaphore_mem>>) src(%48 : memref<2x128xf32, #tpu.memory_space<any>>) dst(%49 : memref<2x128xf32, #tpu.memory_space<any>>)
    %c1_i32_55 = arith.constant 1 : i32
    %c10_i32_56 = arith.constant 10 : i32
    %c0_i32_57 = arith.constant 0 : i32
    %52 = tpu.memref_slice %arg0[%c10_i32_56, %c0_i32_57] : memref<16x128xf32, #tpu.memory_space<any>> -> memref<2x128xf32, #tpu.memory_space<any>>
    %c10_i32_58 = arith.constant 10 : i32
    %c0_i32_59 = arith.constant 0 : i32
    %53 = tpu.memref_slice %arg1[%c10_i32_58, %c0_i32_59] : memref<16x128xf32, #tpu.memory_space<any>> -> memref<2x128xf32, #tpu.memory_space<any>>
    %54 = tpu.memref_slice %arg2[%c1_i32_55] : memref<4x!tpu.dma_semaphore, #tpu.memory_space<semaphore_mem>> -> memref<1x!tpu.dma_semaphore, #tpu.memory_space<semaphore_mem>>
    %55 = tpu.memref_squeeze %54 : memref<1x!tpu.dma_semaphore, #tpu.memory_space<semaphore_mem>> -> memref<!tpu.dma_semaphore, #tpu.memory_space<semaphore_mem>>
    tpu.wait_dma2 semaphore(%55 : memref<!tpu.dma_semaphore, #tpu.memory_space<semaphore_mem>>) src(%52 : memref<2x128xf32, #tpu.memory_space<any>>) dst(%53 : memref<2x128xf32, #tpu.memory_space<any>>)
    %c2_i32_60 = arith.constant 2 : i32
    %c12_i32_61 = arith.constant 12 : i32
    %c0_i32_62 = arith.constant 0 : i32
    %56 = tpu.memref_slice %arg0[%c12_i32_61, %c0_i32_62] : memref<16x128xf32, #tpu.memory_space<any>> -> memref<2x128xf32, #tpu.memory_space<any>>
    %c12_i32_63 = arith.constant 12 : i32
    %c0_i32_64 = arith.constant 0 : i32
    %57 = tpu.memref_slice %arg1[%c12_i32_63, %c0_i32_64] : memref<16x128xf32, #tpu.memory_space<any>> -> memref<2x128xf32, #tpu.memory_space<any>>
    %58 = tpu.memref_slice %arg2[%c2_i32_60] : memref<4x!tpu.dma_semaphore, #tpu.memory_space<semaphore_mem>> -> memref<1x!tpu.dma_semaphore, #tpu.memory_space<semaphore_mem>>
    %59 = tpu.memref_squeeze %58 : memref<1x!tpu.dma_semaphore, #tpu.memory_space<semaphore_mem>> -> memref<!tpu.dma_semaphore, #tpu.memory_space<semaphore_mem>>
    tpu.wait_dma2 semaphore(%59 : memref<!tpu.dma_semaphore, #tpu.memory_space<semaphore_mem>>) src(%56 : memref<2x128xf32, #tpu.memory_space<any>>) dst(%57 : memref<2x128xf32, #tpu.memory_space<any>>)
    %c3_i32_65 = arith.constant 3 : i32
    %c14_i32_66 = arith.constant 14 : i32
    %c0_i32_67 = arith.constant 0 : i32
    %60 = tpu.memref_slice %arg0[%c14_i32_66, %c0_i32_67] : memref<16x128xf32, #tpu.memory_space<any>> -> memref<2x128xf32, #tpu.memory_space<any>>
    %c14_i32_68 = arith.constant 14 : i32
    %c0_i32_69 = arith.constant 0 : i32
    %61 = tpu.memref_slice %arg1[%c14_i32_68, %c0_i32_69] : memref<16x128xf32, #tpu.memory_space<any>> -> memref<2x128xf32, #tpu.memory_space<any>>
    %62 = tpu.memref_slice %arg2[%c3_i32_65] : memref<4x!tpu.dma_semaphore, #tpu.memory_space<semaphore_mem>> -> memref<1x!tpu.dma_semaphore, #tpu.memory_space<semaphore_mem>>
    %63 = tpu.memref_squeeze %62 : memref<1x!tpu.dma_semaphore, #tpu.memory_space<semaphore_mem>> -> memref<!tpu.dma_semaphore, #tpu.memory_space<semaphore_mem>>
    tpu.wait_dma2 semaphore(%63 : memref<!tpu.dma_semaphore, #tpu.memory_space<semaphore_mem>>) src(%60 : memref<2x128xf32, #tpu.memory_space<any>>) dst(%61 : memref<2x128xf32, #tpu.memory_space<any>>)
    return
  }
}

module attributes {stable_mosaic.version = 11 : i64} {
  func.func @_identity_kernel(%arg0: i32, %arg1: memref<2x1024xf32, #tpu.memory_space<vmem>>, %arg2: memref<2x1024xf32, #tpu.memory_space<vmem>>) attributes {dimension_semantics = [#tpu.dimension_semantics<parallel>], iteration_bounds = array<i64: 1>, scalar_prefetch = 0 : i64, scratch_operands = 0 : i64, tpu.core_type = #tpu.core_type<tc>, window_params = [{transform_indices = @transform_0, window_bounds = array<i64: 2, 1024>}, {transform_indices = @transform_1, window_bounds = array<i64: 2, 1024>}]} {
    %c0 = arith.constant 0 : index
    %c0_0 = arith.constant 0 : index
    %0 = vector.load %arg1[%c0, %c0_0] : memref<2x1024xf32, #tpu.memory_space<vmem>>, vector<2x1024xf32>
    %c0_1 = arith.constant 0 : index
    %c0_2 = arith.constant 0 : index
    %1 = vector.load %arg2[%c0_1, %c0_2] : memref<2x1024xf32, #tpu.memory_space<vmem>>, vector<2x1024xf32>
    tpu.vector_store %arg2[%c0_1, %c0_2], %0 {strides = array<i32>} : memref<2x1024xf32, #tpu.memory_space<vmem>>, vector<2x1024xf32>,
    return
  }
  func.func @transform_0(%arg0: i32) -> (i32, i32) {
    %c0_i32 = arith.constant 0 : i32
    %c0_i32_0 = arith.constant 0 : i32
    return %arg0, %c0_i32 : i32, i32
  }
  func.func @transform_1(%arg0: i32) -> (i32, i32) {
    %c0_i32 = arith.constant 0 : i32
    %c0_i32_0 = arith.constant 0 : i32
    return %arg0, %c0_i32 : i32, i32
  }
}

</mosaic_0001>

<llo_original>
// kernel: tpu_custom_call.1
$region0: #{tpu_custom_call.1}
  #allocation0 [shape = 'u32[]', space=smem, size = 0x4, offset = 0x4, fixed_abs, tag = 'smem constant byte address 0x4 - core index']
  #allocation1 [shape = 'u32[144,128]{1,0:T(1,128)}', space=vmem, size = 0x12000, scoped, tag = 'internal scratch']
  #allocation2 [shape = 's32[4]{0}', space=sflag, size = 0x10, scoped, tag = 'scratch operand']
  #allocation3 [shape = 's32[]', space=sflag, size = 0x4, offset = 0, fixed_abs, tag = 'sflag constant byte address 0x0 - dummy sync flag']
  #allocation4 [shape = 'u32[0]{0}', space=smem, size = 0, offset = 0, fixed_abs, tag = 'smem constant byte address 0x0 - null']
  #allocation5 [shape = 's32[]', space=sflag, size = 0x4, offset = 0, fixed_abs, tag = 'sflag constant byte address 0x0 - dummy sync flag']
  #allocation6 [shape = 'u32[0]{0}', space=smem, size = 0, offset = 0, fixed_abs, tag = 'smem constant byte address 0x0 - null']
  #allocation7 [shape = 's32[]', space=sflag, size = 0x4, offset = 0, fixed_abs, tag = 'sflag constant byte address 0x0 - dummy sync flag']
  #allocation8 [shape = 'u32[0]{0}', space=smem, size = 0, offset = 0, fixed_abs, tag = 'smem constant byte address 0x0 - null']
  #allocation9 [shape = 's32[]', space=sflag, size = 0x4, offset = 0, fixed_abs, tag = 'sflag constant byte address 0x0 - dummy sync flag']
  #allocation10 [shape = 'u32[0]{0}', space=smem, size = 0, offset = 0, fixed_abs, tag = 'smem constant byte address 0x0 - null']
  #allocation11 [shape = 's32[]', space=sflag, size = 0x4, offset = 0, fixed_abs, tag = 'sflag constant byte address 0x0 - dummy sync flag']
  #allocation12 [shape = 'u32[0]{0}', space=smem, size = 0, offset = 0, fixed_abs, tag = 'smem constant byte address 0x0 - null']
  #allocation13 [shape = 's32[]', space=sflag, size = 0x4, offset = 0, fixed_abs, tag = 'sflag constant byte address 0x0 - dummy sync flag']
  #allocation14 [shape = 'u32[0]{0}', space=smem, size = 0, offset = 0, fixed_abs, tag = 'smem constant byte address 0x0 - null']
  #allocation15 [shape = 's32[]', space=sflag, size = 0x4, offset = 0, fixed_abs, tag = 'sflag constant byte address 0x0 - dummy sync flag']
  #allocation16 [shape = 'u32[0]{0}', space=smem, size = 0, offset = 0, fixed_abs, tag = 'smem constant byte address 0x0 - null']
  #allocation17 [shape = 's32[]', space=sflag, size = 0x4, offset = 0, fixed_abs, tag = 'sflag constant byte address 0x0 - dummy sync flag']
  #allocation18 [shape = 'u32[0]{0}', space=smem, size = 0, offset = 0, fixed_abs, tag = 'smem constant byte address 0x0 - null']
  %s0 = inlined_call_operand.hbm [shape: f32[16,128], index: 0, kind: input, shape index: {}]
  %s1 = inlined_call_operand.hbm [shape: f32[16,128], index: 1, kind: output, shape index: {}]
  %s2 = sld [smem:[#allocation0]]
  $region2: #{tpu_custom_call.1} parent=0
    _
  %s4 = ssub.s32 1, %s2
  %s5 = scalar_select 0, %s4, %s2
  %s7 = sshll.u32 1, 14
  %s8 = sxor.u32 4294967295, %s7
  %s11 = sshll.u32 3, 24
  %s12 = sxor.u32 4294967295, %s11
  %s13 = sand.u32 0, %s12
  %s15 = sor.u32 %s13, 0
  %18 = dma.general %s0, 32, %s1, [#allocation2], [#allocation3], [#allocation4], %s15, 0
  %s19 = scalar_lea.hbm %s0, 32
  %s20 = scalar_lea.hbm %s1, 32
  %s21 = scalar_lea.sflag [#allocation2], 1
  %s23 = sshll.u32 1, 14
  %s24 = sxor.u32 4294967295, %s23
  %s27 = sshll.u32 3, 24
  %s28 = sxor.u32 4294967295, %s27
  %s29 = sand.u32 0, %s28
  %s31 = sor.u32 %s29, 0
  %34 = dma.general %s19, 32, %s20, %s21, [#allocation5], [#allocation6], %s31, 0
  %s35 = scalar_lea.hbm %s0, 64
  %s36 = scalar_lea.hbm %s1, 64
  %s37 = scalar_lea.sflag [#allocation2], 2
  %s39 = sshll.u32 1, 14
  %s40 = sxor.u32 4294967295, %s39
  %s43 = sshll.u32 3, 24
  %s44 = sxor.u32 4294967295, %s43
  %s45 = sand.u32 0, %s44
  %s47 = sor.u32 %s45, 0
  %50 = dma.general %s35, 32, %s36, %s37, [#allocation7], [#allocation8], %s47, 0
  %s51 = scalar_lea.hbm %s0, 96
  %s52 = scalar_lea.hbm %s1, 96
  %s53 = scalar_lea.sflag [#allocation2], 3
  %s55 = sshll.u32 1, 14
  %s56 = sxor.u32 4294967295, %s55
  %s59 = sshll.u32 3, 24
  %s60 = sxor.u32 4294967295, %s59
  %s61 = sand.u32 0, %s60
  %s63 = sor.u32 %s61, 0
  %66 = dma.general %s51, 32, %s52, %s53, [#allocation9], [#allocation10], %s63, 0
  %s67 = smul.u32 2, 1
  %s68 = sshll.u32 %s67, 4
  %69 = dma.done [#allocation2], %s68
  %s70 = scalar_lea.hbm %s0, 128
  %s71 = scalar_lea.hbm %s1, 128
  %s73 = sshll.u32 1, 14
  %s74 = sxor.u32 4294967295, %s73
  %s77 = sshll.u32 3, 24
  %s78 = sxor.u32 4294967295, %s77
  %s79 = sand.u32 0, %s78
  %s81 = sor.u32 %s79, 0
  %84 = dma.general %s70, 32, %s71, [#allocation2], [#allocation11], [#allocation12], %s81, 0
  %s85 = sshll.u32 %s67, 4
  %86 = dma.done %s21, %s85
  %s87 = scalar_lea.hbm %s0, 160
  %s88 = scalar_lea.hbm %s1, 160
  %s90 = sshll.u32 1, 14
  %s91 = sxor.u32 4294967295, %s90
  %s94 = sshll.u32 3, 24
  %s95 = sxor.u32 4294967295, %s94
  %s96 = sand.u32 0, %s95
  %s98 = sor.u32 %s96, 0
  %101 = dma.general %s87, 32, %s88, %s21, [#allocation13], [#allocation14], %s98, 0
  %s102 = sshll.u32 %s67, 4
  %103 = dma.done %s37, %s102
  %s104 = scalar_lea.hbm %s0, 192
  %s105 = scalar_lea.hbm %s1, 192
  %s107 = sshll.u32 1, 14
  %s108 = sxor.u32 4294967295, %s107
  %s111 = sshll.u32 3, 24
  %s112 = sxor.u32 4294967295, %s111
  %s113 = sand.u32 0, %s112
  %s115 = sor.u32 %s113, 0
  %118 = dma.general %s104, 32, %s105, %s37, [#allocation15], [#allocation16], %s115, 0
  %s119 = sshll.u32 %s67, 4
  %120 = dma.done %s53, %s119
  %s121 = scalar_lea.hbm %s0, 224
  %s122 = scalar_lea.hbm %s1, 224
  %s124 = sshll.u32 1, 14
  %s125 = sxor.u32 4294967295, %s124
  %s128 = sshll.u32 3, 24
  %s129 = sxor.u32 4294967295, %s128
  %s130 = sand.u32 0, %s129
  %s132 = sor.u32 %s130, 0
  %135 = dma.general %s121, 32, %s122, %s53, [#allocation17], [#allocation18], %s132, 0
  %s136 = sshll.u32 %s67, 4
  %137 = dma.done [#allocation2], %s136
  %s138 = sshll.u32 %s67, 4
  %139 = dma.done %s21, %s138
  %s140 = sshll.u32 %s67, 4
  %141 = dma.done %s37, %s140
  %s142 = sshll.u32 %s67, 4
  %143 = dma.done %s53, %s142
  %144 = vsyncmov [#allocation2]
  %s145 = vpop.sfrf %144
  %p146 = scmp.eq.s32.totalorder %s145, 0
  %p147 = pneg %p146
  %149 = shalt.err (%p147)
  %s150 = scalar_lea.sflag [#allocation2], 1
  %151 = vsyncmov %s150
  %s152 = vpop.sfrf %151
  %p153 = scmp.eq.s32.totalorder %s152, 0
  %p154 = pneg %p153
  %156 = shalt.err (%p154)
  %s157 = scalar_lea.sflag [#allocation2], 2
  %158 = vsyncmov %s157
  %s159 = vpop.sfrf %158
  %p160 = scmp.eq.s32.totalorder %s159, 0
  %p161 = pneg %p160
  %163 = shalt.err (%p161)
  %s164 = scalar_lea.sflag [#allocation2], 3
  %165 = vsyncmov %s164
  %s166 = vpop.sfrf %165
  %p167 = scmp.eq.s32.totalorder %s166, 0
  %p168 = pneg %p167
  %170 = shalt.err (%p168)

// kernel: tpu_custom_call.1
$region0: #{tpu_custom_call.1}
  #allocation0 [shape = 'u32[]', space=smem, size = 0x4, offset = 0x4, fixed_abs, tag = 'smem constant byte address 0x4 - core index']
  #allocation1 [shape = 'u32[144,128]{1,0:T(1,128)}', space=vmem, size = 0x12000, scoped, tag = 'internal scratch']
  %s0 = inlined_call_operand.hbm [shape: f32[2,1024], index: 0, kind: input, shape index: {}]
  %s1 = inlined_call_operand.hbm [shape: f32[2,1024], index: 1, kind: output, shape index: {}]
  %s2 = sld [smem:[#allocation0]]
  $region18: #{tpu_custom_call.1} parent=0
    _
  %s4 = ssub.s32 1, %s2
  %s5 = scalar_select 0, %s4, %s2
  $region1: #{tpu_custom_call.1} parent=0
    #allocation2 [shape = 'u8[8192]{0}', space=vmem, size = 0x2000, scoped, tag = 'input window, operand 0, single buffered']
    #allocation3 [shape = 's32[1]{0}', space=sflag, size = 0x4, scoped, tag = 'scoped memory for tpu_custom_call.1']
    #allocation4 [shape = 's32[1]{0}', space=sflag, size = 0x4, scoped, tag = 'scoped memory for tpu_custom_call.1']
    #allocation5 [shape = 'u8[8192]{0}', space=vmem, size = 0x2000, scoped, tag = 'output window, operand 0, single buffered']
    %6 = vsyncpa [#allocation3], 0
    %7 = vsyncpa [#allocation4], 0
    // Predicated region
    $region2: #{tpu_custom_call.1} parent=1 // pred_check
      _
    $region3: #{tpu_custom_call.1} parent=1 // pred_check_branch
      %9 = sbr.rel (0) target = $region5
    $region4: #{tpu_custom_call.1} parent=1 // pred_region
      %s11 = ssub.s32 256, 256
      %12 = vsyncadd [#allocation3], %s11
      %s14 = sshll.u32 [#allocation2], 4
      %s15 = int_to_ptr.vmem [resolvable:$true] %s14
      %17 = dma.hbm_to_vmem [thread:$0]  %s0, 256, %s15, [#allocation3]
    $region5: #{tpu_custom_call.1} parent=1 // pred_fallthru
      _
    // Predicated region
    $region6: #{tpu_custom_call.1} parent=1 // pred_check
      _
    $region7: #{tpu_custom_call.1} parent=1 // pred_check_branch
      %19 = sbr.rel (0) target = $region9
    $region8: #{tpu_custom_call.1} parent=1 // pred_region
      %20 = dma.done [#allocation3], 256
    $region9: #{tpu_custom_call.1} parent=1 // pred_fallthru
      _
    %v21 = vld [vmem:[#allocation2] sm:$0xff]
    %v22 = vld [vmem:[#allocation2 + $0x8] sm:$0xff]
    %23 = vst [vmem:[#allocation5] sm:$0xff] %v21
    %24 = vst [vmem:[#allocation5 + $0x8] sm:$0xff] %v22
    // Predicated region
    $region10: #{tpu_custom_call.1} parent=1 // pred_check
      _
    $region11: #{tpu_custom_call.1} parent=1 // pred_check_branch
      %26 = sbr.rel (0) target = $region13
    $region12: #{tpu_custom_call.1} parent=1 // pred_region
      %s28 = ssub.s32 256, 256
      %29 = vsyncadd [#allocation4], %s28
      %s31 = sshll.u32 [#allocation5], 4
      %s32 = int_to_ptr.vmem [resolvable:$true] %s31
      %34 = dma.vmem_to_hbm [thread:$0]  %s32, 256, %s1, [#allocation4]
    $region13: #{tpu_custom_call.1} parent=1 // pred_fallthru
      _
    // Predicated region
    $region14: #{tpu_custom_call.1} parent=1 // pred_check
      _
    $region15: #{tpu_custom_call.1} parent=1 // pred_check_branch
      %36 = sbr.rel (0) target = $region17
    $region16: #{tpu_custom_call.1} parent=1 // pred_region
      %37 = dma.done [#allocation4], 256
    $region17: #{tpu_custom_call.1} parent=1 // pred_fallthru
      _
    %38 = vsyncpa [#allocation3], 1
    %39 = vsyncpa [#allocation4], 1

</llo_original>
